<compile_context>
chip_gen: v7x
topology: tpu7x:2x2x1
jax: 0.10.0
libtpu: 0.0.40
codegen_flags: <defaults>
</compile_context>

<pallas_src>
import math

import jax
import jax.numpy as jnp
from jax.experimental import pallas as pl
from jax.experimental.pallas import tpu as pltpu


def _round_up(x, m):
    return (x + m - 1) // m * m


def _dct_rows(n, rows, dtype=jnp.float32):
    """First `rows` rows of the orthonormal DCT-II matrix (norm='ortho')."""
    k = jnp.arange(rows, dtype=jnp.float32)[:, None]
    pos = jnp.arange(n, dtype=jnp.float32)[None, :]
    d = jnp.cos(jnp.pi / n * (pos + 0.5) * k)
    scale = jnp.where(k == 0, jnp.sqrt(1.0 / n), jnp.sqrt(2.0 / n))
    return (d * scale).astype(dtype)


def _plan_batch_tile(b, c_in, c_out, n, modes_pad, x_bytes, out_bytes, mm_bytes,
                     tile_budget=36 << 20, max_tb=1024):
    """Pick the batch tile `tb` and padded batch `b_pad`.

    Blocks are (c, tb, n): tb must be a multiple of 8 or the full (padded)
    batch extent, so the result is always a legal Mosaic block.  Double-buffered
    x/out tiles + grid-invariant operands + scratch stay within `tile_budget`
    (kept well under v7x's 64 MiB VMEM).  Large batches are split over >= 2 grid
    steps so both v7x TensorCores get work and DMA overlaps compute.
    """
    if b <= 8:
        return b, b                              # single full-extent block, grid = 1
    const = 2 * mm_bytes * (2 * n * modes_pad) + 2 * 4 * (c_out * c_in * modes_pad)
    per_b = (2 * (c_in * n * x_bytes + c_out * n * out_bytes)   # double-buffered tiles
             + 4 * c_in * modes_pad)                            # f32 z scratch
    avail = max(tile_budget - const, 8 * per_b)
    tb = max(8, min(max_tb, avail // per_b) // 8 * 8)
    b8 = _round_up(b, 8)
    if tb >= b8:
        # Whole batch fits in one step; split in two when large enough so the
        # grid still shards across both TensorCores on v7x.
        tb = _round_up(b8 // 2, 8) if b8 >= 256 else b8
    b_pad = _round_up(b, tb)
    return tb, b_pad


def _make_kernel(c_in, c_out, keep_high, mm_dtype):
    def kernel(x_ref, dlt_ref, dlow_ref, w_ref, o_ref, z_s):
        # x_ref : (c_in, tb, N)              channel-major batch tile
        # dlt   : (N, modes_pad)             D_low.T, zero-padded columns
        # dlow  : (modes_pad, N)             D_low,   zero-padded rows
        # w_ref : (c_out*c_in, modes_pad)    folded weights (f32)
        # o_ref : (c_out, tb, N)
        # z_s   : (c_in, tb, modes_pad)      f32 scratch
        # Forward DCT (low modes only): one contiguous MXU matmul per channel,
        # batch tile folded into the matmul rows, lane-dense output.
        for i in range(c_in):
            z_s[i] = jnp.dot(x_ref[i].astype(mm_dtype), dlt_ref[...],
                             preferred_element_type=jnp.float32)
        # Channel mixing (vectorized over the whole batch tile) + inverse DCT.
        for o in range(c_out):
            acc = w_ref[pl.ds(o * c_in, 1), :] * z_s[0]
            for i in range(1, c_in):
                acc = acc + w_ref[pl.ds(o * c_in + i, 1), :] * z_s[i]
            corr = jnp.dot(acc.astype(mm_dtype), dlow_ref[...],
                           preferred_element_type=jnp.float32)
            if keep_high:
                # Residual read of x happens here (x is not kept live across the body).
                corr = corr + x_ref[o].astype(jnp.float32)
            o_ref[o] = corr.astype(o_ref.dtype)
    return kernel


def dct_conv1d(x, weights1, modes1, keep_high=True, identity=False,
               matmul_dtype=jnp.bfloat16):
    """Pallas TPU implementation of DCTConv1d.forward.

    x:        (B, C_in, N)
    weights1: indexed [o, i, k] by the reference einsum 'bix,oix->box'.  (The
              torch module allocates it as (in_channels, out_channels, modes1)
              but the einsum uses axis 0 as the OUTPUT channel; this is only
              consistent for square channel counts, which keep_high=True
              requires anyway — asserted below.)
    matmul_dtype: operand dtype for the two DCT matmuls.  bf16 (default) is
              MXU-native (~3x throughput, f32 accumulation); pass jnp.float32
              for strict numerics.
    """
    b, c_in, n = x.shape
    if identity:
        # Orthonormal DCT followed by its inverse is the identity.
        return x

    c_out = weights1.shape[0]
    assert weights1.shape[1] == c_in, "einsum 'bix,oix->box' needs weights1.shape[1] == in_channels"
    assert weights1.shape[2] == modes1, "weights1 last dim must equal modes1"
    assert modes1 <= n, "modes1 must not exceed the signal length"
    if keep_high:
        assert c_out == c_in, "keep_high=True requires out_channels == in_channels"

    mm_dtype = jnp.dtype(matmul_dtype)
    modes_pad = _round_up(modes1, 128)      # lane-dense intermediates (no-op math)

    # Wrapper-side constants (built once).
    dlow = jnp.zeros((modes_pad, n), jnp.float32).at[:modes1, :].set(_dct_rows(n, modes1))
    dlt = dlow.T                                               # (N, modes_pad)
    w = weights1.astype(jnp.float32)
    if keep_high:
        # Fold the "+ unmodified low/high modes" identity into the weights.
        w = w - jnp.eye(c_in, dtype=jnp.float32)[:, :, None]
    w2 = jnp.zeros((c_out * c_in, modes_pad), jnp.float32)
    w2 = w2.at[:, :modes1].set(w.reshape(c_out * c_in, modes1))
    dlt = dlt.astype(mm_dtype)
    dlow = dlow.astype(mm_dtype)

    x_bytes = jnp.dtype(x.dtype).itemsize
    tb, b_pad = _plan_batch_tile(b, c_in, c_out, n, modes_pad,
                                 x_bytes, x_bytes, mm_dtype.itemsize)

    # Channel-major (C, B, N) layout: pure layout plumbing done by XLA so every
    # in-kernel access is a contiguous, lane-dense slab.
    xt = jnp.transpose(x, (1, 0, 2))
    if b_pad != b:
        xt = jnp.pad(xt, ((0, 0), (0, b_pad - b), (0, 0)))

    grid = (b_pad // tb,)
    flops = 2 * b_pad * (c_in * n * modes_pad            # forward DCT
                         + c_in * c_out * modes_pad      # channel mixing
                         + c_out * modes_pad * n)        # inverse DCT
    bytes_accessed = (c_in * b_pad * n * x_bytes + c_out * b_pad * n * x_bytes
                      + 2 * n * modes_pad * mm_dtype.itemsize
                      + c_out * c_in * modes_pad * 4)

    out_cm = pl.pallas_call(
        _make_kernel(c_in, c_out, keep_high, mm_dtype),
        out_shape=jax.ShapeDtypeStruct((c_out, b_pad, n), x.dtype),
        grid_spec=pltpu.PrefetchScalarGridSpec(
            num_scalar_prefetch=0,
            grid=grid,
            in_specs=[
                # Batch tile of x (channel-major); tb is a multiple of 8 or the
                # full batch extent, so the block is always legal.
                pl.BlockSpec((c_in, tb, n), lambda j: (0, j, 0)),
                # Grid-invariant operands: same block every step, so they are
                # only DMA'd once; after modes padding they stay small.
                pl.BlockSpec((n, modes_pad), lambda j: (0, 0)),            # D_low.T
                pl.BlockSpec((modes_pad, n), lambda j: (0, 0)),            # D_low
                pl.BlockSpec((c_out * c_in, modes_pad), lambda j: (0, 0)),  # W'
            ],
            out_specs=pl.BlockSpec((c_out, tb, n), lambda j: (0, j, 0)),
            scratch_shapes=[pltpu.VMEM((c_in, tb, modes_pad), jnp.float32)],
        ),
        compiler_params=pltpu.CompilerParams(
            dimension_semantics=("parallel",),
            vmem_limit_bytes=48 * 1024 * 1024,   # v7x-safe (< 64 MiB physical)
        ),
        cost_estimate=pl.CostEstimate(flops=int(flops), transcendentals=0,
                                      bytes_accessed=int(bytes_accessed)),
    )(xt, dlt, dlow, w2)

    out = jnp.transpose(out_cm[:, :b, :], (1, 0, 2))
    return out


def dct_conv1d_reference(x, weights1, modes1, keep_high=True, identity=False):
    """Pure-JAX reference matching the PyTorch forward (full-spectrum formulation)."""
    b, c_in, n = x.shape
    d = _dct_rows(n, n)
    z = jnp.einsum('bin,kn->bik', x, d)                        # dct1d(x, norm='ortho')
    if identity:
        z_out = z
    else:
        low = jnp.einsum('bix,oix->box', z[..., :modes1], weights1)
        if keep_high:
            z_out = jnp.concatenate([low, z[..., modes1:]], axis=-1)
        else:
            z_out = jnp.pad(low, ((0, 0), (0, 0), (0, n - modes1)))
    return jnp.einsum('bok,kn->bon', z_out, d)                 # idct1d(z_out, norm='ortho')


def _rel_err(a, b):
    return jnp.linalg.norm((a - b).ravel()) / jnp.linalg.norm(b.ravel())


if __name__ == "__main__":
    # Module config: in=out=4 channels, modes1=8, keep_high=True, weight_init=2
    # (variance preserving), identity=False; small shapes: batch=2, N=16.
    in_channels = out_channels = 4
    modes1 = 8
    signal_resolution = 1024
    batch, n = 2, 16
    scale = math.sqrt(1.0 / in_channels * signal_resolution / modes1)

    key = jax.random.PRNGKey(0)
    kx, kw, kx2, kw2 = jax.random.split(key, 4)
    x = jax.random.normal(kx, (batch, in_channels, n), dtype=jnp.float32)
    weights1 = scale * jax.random.normal(
        kw, (in_channels, out_channels, modes1), dtype=jnp.float32)

    # --- strict-numerics path (f32 matmul operands) ---
    ref = dct_conv1d_reference(x, weights1, modes1, keep_high=True)
    out = jax.block_until_ready(
        dct_conv1d(x, weights1, modes1, keep_high=True, matmul_dtype=jnp.float32))
    assert out.shape == (batch, out_channels, n)
    assert jnp.allclose(out, ref, atol=2e-4, rtol=2e-4), "f32 keep_high=True mismatch"

    ref_lo = dct_conv1d_reference(x, weights1, modes1, keep_high=False)
    out_lo = jax.block_until_ready(
        dct_conv1d(x, weights1, modes1, keep_high=False, matmul_dtype=jnp.float32))
    assert jnp.allclose(out_lo, ref_lo, atol=2e-4, rtol=2e-4), "f32 keep_high=False mismatch"

    # --- default fast path (bf16 MXU operands, f32 accumulation) ---
    out_bf = jax.block_until_ready(dct_conv1d(x, weights1, modes1, keep_high=True))
    assert _rel_err(out_bf, ref) < 8e-2, "bf16 keep_high=True mismatch"
    out_bf_lo = jax.block_until_ready(dct_conv1d(x, weights1, modes1, keep_high=False))
    assert _rel_err(out_bf_lo, ref_lo) < 8e-2, "bf16 keep_high=False mismatch"

    # --- identity path (wrapper short-circuit: DCT o IDCT == identity) ---
    out_id = jax.block_until_ready(dct_conv1d(x, weights1, modes1, identity=True))
    ref_id = dct_conv1d_reference(x, weights1, modes1, identity=True)
    assert jnp.allclose(out_id, ref_id, atol=2e-4, rtol=2e-4), "identity mismatch"

    # --- second shape exercising batch padding (b=10 -> b_pad=16) and larger N ---
    b2, n2, m2 = 10, 256, 16
    x2 = jax.random.normal(kx2, (b2, in_channels, n2), dtype=jnp.float32)
    w2 = math.sqrt(1.0 / in_channels * signal_resolution / m2) * jax.random.normal(
        kw2, (in_channels, out_channels, m2), dtype=jnp.float32)
    ref2 = dct_conv1d_reference(x2, w2, m2, keep_high=True)
    out2 = jax.block_until_ready(
        dct_conv1d(x2, w2, m2, keep_high=True, matmul_dtype=jnp.float32))
    assert jnp.allclose(out2, ref2, atol=1e-3, rtol=1e-3), "f32 padded-batch mismatch"
    out2_bf = jax.block_until_ready(dct_conv1d(x2, w2, m2, keep_high=True))
    assert _rel_err(out2_bf, ref2) < 8e-2, "bf16 padded-batch mismatch"

    print("KERNEL_OK")
</pallas_src>

<mosaic_0001>
module attributes {stable_mosaic.version = 11 : i64} {
  func.func @kernel(%arg0: i32, %arg1: memref<4x2x16xf32, #tpu.memory_space<vmem>>, %arg2: memref<16x128xf32, #tpu.memory_space<vmem>>, %arg3: memref<128x16xf32, #tpu.memory_space<vmem>>, %arg4: memref<16x128xf32, #tpu.memory_space<vmem>>, %arg5: memref<4x2x16xf32, #tpu.memory_space<vmem>>, %arg6: memref<4x2x128xf32, #tpu.memory_space<vmem>>) attributes {dimension_semantics = [#tpu.dimension_semantics<parallel>], iteration_bounds = array<i64: 1>, scalar_prefetch = 0 : i64, scratch_operands = 1 : i64, tpu.core_type = #tpu.core_type<tc>, window_params = [{transform_indices = @transform_0, window_bounds = array<i64: 4, 2, 16>}, {pipeline_mode = #tpu.pipeline_mode<synchronous>, transform_indices = @transform_1, window_bounds = array<i64: 16, 128>}, {pipeline_mode = #tpu.pipeline_mode<synchronous>, transform_indices = @transform_2, window_bounds = array<i64: 128, 16>}, {pipeline_mode = #tpu.pipeline_mode<synchronous>, transform_indices = @transform_3, window_bounds = array<i64: 16, 128>}, {transform_indices = @transform_4, window_bounds = array<i64: 4, 2, 16>}]} {
    %c0 = arith.constant 0 : index
    %c0_0 = arith.constant 0 : index
    %c0_1 = arith.constant 0 : index
    %0 = vector.load %arg1[%c0, %c0_0, %c0_1] : memref<4x2x16xf32, #tpu.memory_space<vmem>>, vector<1x2x16xf32>
    %1 = vector.shape_cast %0 : vector<1x2x16xf32> to vector<2x16xf32>
    %c0_2 = arith.constant 0 : index
    %c0_3 = arith.constant 0 : index
    %2 = vector.load %arg2[%c0_2, %c0_3] : memref<16x128xf32, #tpu.memory_space<vmem>>, vector<16x128xf32>
    %cst = arith.constant dense<0.000000e+00> : vector<2x128xf32>
    %3 = tpu.matmul %1, %2, %cst {dimension_numbers = #tpu.dot_dimension_numbers<[1], [0], [0], [1], [0, 0, 1, 1], [], []>} : vector<2x16xf32>, vector<16x128xf32>, vector<2x128xf32> -> vector<2x128xf32>
    %c0_4 = arith.constant 0 : index
    %c0_5 = arith.constant 0 : index
    %c0_6 = arith.constant 0 : index
    %4 = vector.load %arg6[%c0_4, %c0_5, %c0_6] : memref<4x2x128xf32, #tpu.memory_space<vmem>>, vector<1x2x128xf32>
    %5 = vector.shape_cast %4 : vector<1x2x128xf32> to vector<2x128xf32>
    %6 = vector.shape_cast %3 : vector<2x128xf32> to vector<1x2x128xf32>
    tpu.vector_store %arg6[%c0_4, %c0_5, %c0_6], %6 {strides = array<i32>} : memref<4x2x128xf32, #tpu.memory_space<vmem>>, vector<1x2x128xf32>,
    %c1 = arith.constant 1 : index
    %c0_7 = arith.constant 0 : index
    %c0_8 = arith.constant 0 : index
    %7 = vector.load %arg1[%c1, %c0_7, %c0_8] : memref<4x2x16xf32, #tpu.memory_space<vmem>>, vector<1x2x16xf32>
    %8 = vector.shape_cast %7 : vector<1x2x16xf32> to vector<2x16xf32>
    %c0_9 = arith.constant 0 : index
    %c0_10 = arith.constant 0 : index
    %9 = vector.load %arg2[%c0_9, %c0_10] : memref<16x128xf32, #tpu.memory_space<vmem>>, vector<16x128xf32>
    %cst_11 = arith.constant dense<0.000000e+00> : vector<2x128xf32>
    %10 = tpu.matmul %8, %9, %cst_11 {dimension_numbers = #tpu.dot_dimension_numbers<[1], [0], [0], [1], [0, 0, 1, 1], [], []>} : vector<2x16xf32>, vector<16x128xf32>, vector<2x128xf32> -> vector<2x128xf32>
    %c1_12 = arith.constant 1 : index
    %c0_13 = arith.constant 0 : index
    %c0_14 = arith.constant 0 : index
    %11 = vector.load %arg6[%c1_12, %c0_13, %c0_14] : memref<4x2x128xf32, #tpu.memory_space<vmem>>, vector<1x2x128xf32>
    %12 = vector.shape_cast %11 : vector<1x2x128xf32> to vector<2x128xf32>
    %13 = vector.shape_cast %10 : vector<2x128xf32> to vector<1x2x128xf32>
    tpu.vector_store %arg6[%c1_12, %c0_13, %c0_14], %13 {strides = array<i32>} : memref<4x2x128xf32, #tpu.memory_space<vmem>>, vector<1x2x128xf32>,
    %c2 = arith.constant 2 : index
    %c0_15 = arith.constant 0 : index
    %c0_16 = arith.constant 0 : index
    %14 = vector.load %arg1[%c2, %c0_15, %c0_16] : memref<4x2x16xf32, #tpu.memory_space<vmem>>, vector<1x2x16xf32>
    %15 = vector.shape_cast %14 : vector<1x2x16xf32> to vector<2x16xf32>
    %c0_17 = arith.constant 0 : index
    %c0_18 = arith.constant 0 : index
    %16 = vector.load %arg2[%c0_17, %c0_18] : memref<16x128xf32, #tpu.memory_space<vmem>>, vector<16x128xf32>
    %cst_19 = arith.constant dense<0.000000e+00> : vector<2x128xf32>
    %17 = tpu.matmul %15, %16, %cst_19 {dimension_numbers = #tpu.dot_dimension_numbers<[1], [0], [0], [1], [0, 0, 1, 1], [], []>} : vector<2x16xf32>, vector<16x128xf32>, vector<2x128xf32> -> vector<2x128xf32>
    %c2_20 = arith.constant 2 : index
    %c0_21 = arith.constant 0 : index
    %c0_22 = arith.constant 0 : index
    %18 = vector.load %arg6[%c2_20, %c0_21, %c0_22] : memref<4x2x128xf32, #tpu.memory_space<vmem>>, vector<1x2x128xf32>
    %19 = vector.shape_cast %18 : vector<1x2x128xf32> to vector<2x128xf32>
    %20 = vector.shape_cast %17 : vector<2x128xf32> to vector<1x2x128xf32>
    tpu.vector_store %arg6[%c2_20, %c0_21, %c0_22], %20 {strides = array<i32>} : memref<4x2x128xf32, #tpu.memory_space<vmem>>, vector<1x2x128xf32>,
    %c3 = arith.constant 3 : index
    %c0_23 = arith.constant 0 : index
    %c0_24 = arith.constant 0 : index
    %21 = vector.load %arg1[%c3, %c0_23, %c0_24] : memref<4x2x16xf32, #tpu.memory_space<vmem>>, vector<1x2x16xf32>
    %22 = vector.shape_cast %21 : vector<1x2x16xf32> to vector<2x16xf32>
    %c0_25 = arith.constant 0 : index
    %c0_26 = arith.constant 0 : index
    %23 = vector.load %arg2[%c0_25, %c0_26] : memref<16x128xf32, #tpu.memory_space<vmem>>, vector<16x128xf32>
    %cst_27 = arith.constant dense<0.000000e+00> : vector<2x128xf32>
    %24 = tpu.matmul %22, %23, %cst_27 {dimension_numbers = #tpu.dot_dimension_numbers<[1], [0], [0], [1], [0, 0, 1, 1], [], []>} : vector<2x16xf32>, vector<16x128xf32>, vector<2x128xf32> -> vector<2x128xf32>
    %c3_28 = arith.constant 3 : index
    %c0_29 = arith.constant 0 : index
    %c0_30 = arith.constant 0 : index
    %25 = vector.load %arg6[%c3_28, %c0_29, %c0_30] : memref<4x2x128xf32, #tpu.memory_space<vmem>>, vector<1x2x128xf32>
    %26 = vector.shape_cast %25 : vector<1x2x128xf32> to vector<2x128xf32>
    %27 = vector.shape_cast %24 : vector<2x128xf32> to vector<1x2x128xf32>
    tpu.vector_store %arg6[%c3_28, %c0_29, %c0_30], %27 {strides = array<i32>} : memref<4x2x128xf32, #tpu.memory_space<vmem>>, vector<1x2x128xf32>,
    %c0_31 = arith.constant 0 : index
    %c0_32 = arith.constant 0 : index
    %28 = vector.load %arg4[%c0_31, %c0_32] : memref<16x128xf32, #tpu.memory_space<vmem>>, vector<1x128xf32>
    %c0_33 = arith.constant 0 : index
    %c0_34 = arith.constant 0 : index
    %c0_35 = arith.constant 0 : index
    %29 = vector.load %arg6[%c0_33, %c0_34, %c0_35] : memref<4x2x128xf32, #tpu.memory_space<vmem>>, vector<1x2x128xf32>
    %30 = vector.shape_cast %29 : vector<1x2x128xf32> to vector<2x128xf32>
    %31 = vector.broadcast %28 : vector<1x128xf32> to vector<2x128xf32>
    %32 = arith.mulf %31, %30 : vector<2x128xf32>
    %c1_36 = arith.constant 1 : index
    %c0_37 = arith.constant 0 : index
    %33 = vector.load %arg4[%c1_36, %c0_37] : memref<16x128xf32, #tpu.memory_space<vmem>>, vector<1x128xf32>
    %c1_38 = arith.constant 1 : index
    %c0_39 = arith.constant 0 : index
    %c0_40 = arith.constant 0 : index
    %34 = vector.load %arg6[%c1_38, %c0_39, %c0_40] : memref<4x2x128xf32, #tpu.memory_space<vmem>>, vector<1x2x128xf32>
    %35 = vector.shape_cast %34 : vector<1x2x128xf32> to vector<2x128xf32>
    %36 = vector.broadcast %33 : vector<1x128xf32> to vector<2x128xf32>
    %37 = arith.mulf %36, %35 : vector<2x128xf32>
    %38 = arith.addf %32, %37 : vector<2x128xf32>
    %c2_41 = arith.constant 2 : index
    %c0_42 = arith.constant 0 : index
    %39 = vector.load %arg4[%c2_41, %c0_42] : memref<16x128xf32, #tpu.memory_space<vmem>>, vector<1x128xf32>
    %c2_43 = arith.constant 2 : index
    %c0_44 = arith.constant 0 : index
    %c0_45 = arith.constant 0 : index
    %40 = vector.load %arg6[%c2_43, %c0_44, %c0_45] : memref<4x2x128xf32, #tpu.memory_space<vmem>>, vector<1x2x128xf32>
    %41 = vector.shape_cast %40 : vector<1x2x128xf32> to vector<2x128xf32>
    %42 = vector.broadcast %39 : vector<1x128xf32> to vector<2x128xf32>
    %43 = arith.mulf %42, %41 : vector<2x128xf32>
    %44 = arith.addf %38, %43 : vector<2x128xf32>
    %c3_46 = arith.constant 3 : index
    %c0_47 = arith.constant 0 : index
    %45 = vector.load %arg4[%c3_46, %c0_47] : memref<16x128xf32, #tpu.memory_space<vmem>>, vector<1x128xf32>
    %c3_48 = arith.constant 3 : index
    %c0_49 = arith.constant 0 : index
    %c0_50 = arith.constant 0 : index
    %46 = vector.load %arg6[%c3_48, %c0_49, %c0_50] : memref<4x2x128xf32, #tpu.memory_space<vmem>>, vector<1x2x128xf32>
    %47 = vector.shape_cast %46 : vector<1x2x128xf32> to vector<2x128xf32>
    %48 = vector.broadcast %45 : vector<1x128xf32> to vector<2x128xf32>
    %49 = arith.mulf %48, %47 : vector<2x128xf32>
    %50 = arith.addf %44, %49 : vector<2x128xf32>
    %c0_51 = arith.constant 0 : index
    %c0_52 = arith.constant 0 : index
    %51 = vector.load %arg3[%c0_51, %c0_52] : memref<128x16xf32, #tpu.memory_space<vmem>>, vector<128x16xf32>
    %cst_53 = arith.constant dense<0.000000e+00> : vector<2x16xf32>
    %52 = tpu.matmul %50, %51, %cst_53 {dimension_numbers = #tpu.dot_dimension_numbers<[1], [0], [0], [1], [0, 0, 1, 1], [], []>} : vector<2x128xf32>, vector<128x16xf32>, vector<2x16xf32> -> vector<2x16xf32>
    %c0_54 = arith.constant 0 : index
    %c0_55 = arith.constant 0 : index
    %c0_56 = arith.constant 0 : index
    %53 = vector.load %arg1[%c0_54, %c0_55, %c0_56] : memref<4x2x16xf32, #tpu.memory_space<vmem>>, vector<1x2x16xf32>
    %54 = vector.shape_cast %53 : vector<1x2x16xf32> to vector<2x16xf32>
    %55 = arith.addf %52, %54 : vector<2x16xf32>
    %c0_57 = arith.constant 0 : index
    %c0_58 = arith.constant 0 : index
    %c0_59 = arith.constant 0 : index
    %56 = vector.load %arg5[%c0_57, %c0_58, %c0_59] : memref<4x2x16xf32, #tpu.memory_space<vmem>>, vector<1x2x16xf32>
    %57 = vector.shape_cast %56 : vector<1x2x16xf32> to vector<2x16xf32>
    %58 = vector.shape_cast %55 : vector<2x16xf32> to vector<1x2x16xf32>
    tpu.vector_store %arg5[%c0_57, %c0_58, %c0_59], %58 {strides = array<i32>} : memref<4x2x16xf32, #tpu.memory_space<vmem>>, vector<1x2x16xf32>,
    %c4 = arith.constant 4 : index
    %c0_60 = arith.constant 0 : index
    %59 = vector.load %arg4[%c4, %c0_60] : memref<16x128xf32, #tpu.memory_space<vmem>>, vector<1x128xf32>
    %c0_61 = arith.constant 0 : index
    %c0_62 = arith.constant 0 : index
    %c0_63 = arith.constant 0 : index
    %60 = vector.load %arg6[%c0_61, %c0_62, %c0_63] : memref<4x2x128xf32, #tpu.memory_space<vmem>>, vector<1x2x128xf32>
    %61 = vector.shape_cast %60 : vector<1x2x128xf32> to vector<2x128xf32>
    %62 = vector.broadcast %59 : vector<1x128xf32> to vector<2x128xf32>
    %63 = arith.mulf %62, %61 : vector<2x128xf32>
    %c5 = arith.constant 5 : index
    %c0_64 = arith.constant 0 : index
    %64 = vector.load %arg4[%c5, %c0_64] : memref<16x128xf32, #tpu.memory_space<vmem>>, vector<1x128xf32>
    %c1_65 = arith.constant 1 : index
    %c0_66 = arith.constant 0 : index
    %c0_67 = arith.constant 0 : index
    %65 = vector.load %arg6[%c1_65, %c0_66, %c0_67] : memref<4x2x128xf32, #tpu.memory_space<vmem>>, vector<1x2x128xf32>
    %66 = vector.shape_cast %65 : vector<1x2x128xf32> to vector<2x128xf32>
    %67 = vector.broadcast %64 : vector<1x128xf32> to vector<2x128xf32>
    %68 = arith.mulf %67, %66 : vector<2x128xf32>
    %69 = arith.addf %63, %68 : vector<2x128xf32>
    %c6 = arith.constant 6 : index
    %c0_68 = arith.constant 0 : index
    %70 = vector.load %arg4[%c6, %c0_68] : memref<16x128xf32, #tpu.memory_space<vmem>>, vector<1x128xf32>
    %c2_69 = arith.constant 2 : index
    %c0_70 = arith.constant 0 : index
    %c0_71 = arith.constant 0 : index
    %71 = vector.load %arg6[%c2_69, %c0_70, %c0_71] : memref<4x2x128xf32, #tpu.memory_space<vmem>>, vector<1x2x128xf32>
    %72 = vector.shape_cast %71 : vector<1x2x128xf32> to vector<2x128xf32>
    %73 = vector.broadcast %70 : vector<1x128xf32> to vector<2x128xf32>
    %74 = arith.mulf %73, %72 : vector<2x128xf32>
    %75 = arith.addf %69, %74 : vector<2x128xf32>
    %c7 = arith.constant 7 : index
    %c0_72 = arith.constant 0 : index
    %76 = vector.load %arg4[%c7, %c0_72] : memref<16x128xf32, #tpu.memory_space<vmem>>, vector<1x128xf32>
    %c3_73 = arith.constant 3 : index
    %c0_74 = arith.constant 0 : index
    %c0_75 = arith.constant 0 : index
    %77 = vector.load %arg6[%c3_73, %c0_74, %c0_75] : memref<4x2x128xf32, #tpu.memory_space<vmem>>, vector<1x2x128xf32>
    %78 = vector.shape_cast %77 : vector<1x2x128xf32> to vector<2x128xf32>
    %79 = vector.broadcast %76 : vector<1x128xf32> to vector<2x128xf32>
    %80 = arith.mulf %79, %78 : vector<2x128xf32>
    %81 = arith.addf %75, %80 : vector<2x128xf32>
    %c0_76 = arith.constant 0 : index
    %c0_77 = arith.constant 0 : index
    %82 = vector.load %arg3[%c0_76, %c0_77] : memref<128x16xf32, #tpu.memory_space<vmem>>, vector<128x16xf32>
    %cst_78 = arith.constant dense<0.000000e+00> : vector<2x16xf32>
    %83 = tpu.matmul %81, %82, %cst_78 {dimension_numbers = #tpu.dot_dimension_numbers<[1], [0], [0], [1], [0, 0, 1, 1], [], []>} : vector<2x128xf32>, vector<128x16xf32>, vector<2x16xf32> -> vector<2x16xf32>
    %c1_79 = arith.constant 1 : index
    %c0_80 = arith.constant 0 : index
    %c0_81 = arith.constant 0 : index
    %84 = vector.load %arg1[%c1_79, %c0_80, %c0_81] : memref<4x2x16xf32, #tpu.memory_space<vmem>>, vector<1x2x16xf32>
    %85 = vector.shape_cast %84 : vector<1x2x16xf32> to vector<2x16xf32>
    %86 = arith.addf %83, %85 : vector<2x16xf32>
    %c1_82 = arith.constant 1 : index
    %c0_83 = arith.constant 0 : index
    %c0_84 = arith.constant 0 : index
    %87 = vector.load %arg5[%c1_82, %c0_83, %c0_84] : memref<4x2x16xf32, #tpu.memory_space<vmem>>, vector<1x2x16xf32>
    %88 = vector.shape_cast %87 : vector<1x2x16xf32> to vector<2x16xf32>
    %89 = vector.shape_cast %86 : vector<2x16xf32> to vector<1x2x16xf32>
    tpu.vector_store %arg5[%c1_82, %c0_83, %c0_84], %89 {strides = array<i32>} : memref<4x2x16xf32, #tpu.memory_space<vmem>>, vector<1x2x16xf32>,
    %c8 = arith.constant 8 : index
    %c0_85 = arith.constant 0 : index
    %90 = vector.load %arg4[%c8, %c0_85] : memref<16x128xf32, #tpu.memory_space<vmem>>, vector<1x128xf32>
    %c0_86 = arith.constant 0 : index
    %c0_87 = arith.constant 0 : index
    %c0_88 = arith.constant 0 : index
    %91 = vector.load %arg6[%c0_86, %c0_87, %c0_88] : memref<4x2x128xf32, #tpu.memory_space<vmem>>, vector<1x2x128xf32>
    %92 = vector.shape_cast %91 : vector<1x2x128xf32> to vector<2x128xf32>
    %93 = vector.broadcast %90 : vector<1x128xf32> to vector<2x128xf32>
    %94 = arith.mulf %93, %92 : vector<2x128xf32>
    %c9 = arith.constant 9 : index
    %c0_89 = arith.constant 0 : index
    %95 = vector.load %arg4[%c9, %c0_89] : memref<16x128xf32, #tpu.memory_space<vmem>>, vector<1x128xf32>
    %c1_90 = arith.constant 1 : index
    %c0_91 = arith.constant 0 : index
    %c0_92 = arith.constant 0 : index
    %96 = vector.load %arg6[%c1_90, %c0_91, %c0_92] : memref<4x2x128xf32, #tpu.memory_space<vmem>>, vector<1x2x128xf32>
    %97 = vector.shape_cast %96 : vector<1x2x128xf32> to vector<2x128xf32>
    %98 = vector.broadcast %95 : vector<1x128xf32> to vector<2x128xf32>
    %99 = arith.mulf %98, %97 : vector<2x128xf32>
    %100 = arith.addf %94, %99 : vector<2x128xf32>
    %c10 = arith.constant 10 : index
    %c0_93 = arith.constant 0 : index
    %101 = vector.load %arg4[%c10, %c0_93] : memref<16x128xf32, #tpu.memory_space<vmem>>, vector<1x128xf32>
    %c2_94 = arith.constant 2 : index
    %c0_95 = arith.constant 0 : index
    %c0_96 = arith.constant 0 : index
    %102 = vector.load %arg6[%c2_94, %c0_95, %c0_96] : memref<4x2x128xf32, #tpu.memory_space<vmem>>, vector<1x2x128xf32>
    %103 = vector.shape_cast %102 : vector<1x2x128xf32> to vector<2x128xf32>
    %104 = vector.broadcast %101 : vector<1x128xf32> to vector<2x128xf32>
    %105 = arith.mulf %104, %103 : vector<2x128xf32>
    %106 = arith.addf %100, %105 : vector<2x128xf32>
    %c11 = arith.constant 11 : index
    %c0_97 = arith.constant 0 : index
    %107 = vector.load %arg4[%c11, %c0_97] : memref<16x128xf32, #tpu.memory_space<vmem>>, vector<1x128xf32>
    %c3_98 = arith.constant 3 : index
    %c0_99 = arith.constant 0 : index
    %c0_100 = arith.constant 0 : index
    %108 = vector.load %arg6[%c3_98, %c0_99, %c0_100] : memref<4x2x128xf32, #tpu.memory_space<vmem>>, vector<1x2x128xf32>
    %109 = vector.shape_cast %108 : vector<1x2x128xf32> to vector<2x128xf32>
    %110 = vector.broadcast %107 : vector<1x128xf32> to vector<2x128xf32>
    %111 = arith.mulf %110, %109 : vector<2x128xf32>
    %112 = arith.addf %106, %111 : vector<2x128xf32>
    %c0_101 = arith.constant 0 : index
    %c0_102 = arith.constant 0 : index
    %113 = vector.load %arg3[%c0_101, %c0_102] : memref<128x16xf32, #tpu.memory_space<vmem>>, vector<128x16xf32>
    %cst_103 = arith.constant dense<0.000000e+00> : vector<2x16xf32>
    %114 = tpu.matmul %112, %113, %cst_103 {dimension_numbers = #tpu.dot_dimension_numbers<[1], [0], [0], [1], [0, 0, 1, 1], [], []>} : vector<2x128xf32>, vector<128x16xf32>, vector<2x16xf32> -> vector<2x16xf32>
    %c2_104 = arith.constant 2 : index
    %c0_105 = arith.constant 0 : index
    %c0_106 = arith.constant 0 : index
    %115 = vector.load %arg1[%c2_104, %c0_105, %c0_106] : memref<4x2x16xf32, #tpu.memory_space<vmem>>, vector<1x2x16xf32>
    %116 = vector.shape_cast %115 : vector<1x2x16xf32> to vector<2x16xf32>
    %117 = arith.addf %114, %116 : vector<2x16xf32>
    %c2_107 = arith.constant 2 : index
    %c0_108 = arith.constant 0 : index
    %c0_109 = arith.constant 0 : index
    %118 = vector.load %arg5[%c2_107, %c0_108, %c0_109] : memref<4x2x16xf32, #tpu.memory_space<vmem>>, vector<1x2x16xf32>
    %119 = vector.shape_cast %118 : vector<1x2x16xf32> to vector<2x16xf32>
    %120 = vector.shape_cast %117 : vector<2x16xf32> to vector<1x2x16xf32>
    tpu.vector_store %arg5[%c2_107, %c0_108, %c0_109], %120 {strides = array<i32>} : memref<4x2x16xf32, #tpu.memory_space<vmem>>, vector<1x2x16xf32>,
    %c12 = arith.constant 12 : index
    %c0_110 = arith.constant 0 : index
    %121 = vector.load %arg4[%c12, %c0_110] : memref<16x128xf32, #tpu.memory_space<vmem>>, vector<1x128xf32>
    %c0_111 = arith.constant 0 : index
    %c0_112 = arith.constant 0 : index
    %c0_113 = arith.constant 0 : index
    %122 = vector.load %arg6[%c0_111, %c0_112, %c0_113] : memref<4x2x128xf32, #tpu.memory_space<vmem>>, vector<1x2x128xf32>
    %123 = vector.shape_cast %122 : vector<1x2x128xf32> to vector<2x128xf32>
    %124 = vector.broadcast %121 : vector<1x128xf32> to vector<2x128xf32>
    %125 = arith.mulf %124, %123 : vector<2x128xf32>
    %c13 = arith.constant 13 : index
    %c0_114 = arith.constant 0 : index
    %126 = vector.load %arg4[%c13, %c0_114] : memref<16x128xf32, #tpu.memory_space<vmem>>, vector<1x128xf32>
    %c1_115 = arith.constant 1 : index
    %c0_116 = arith.constant 0 : index
    %c0_117 = arith.constant 0 : index
    %127 = vector.load %arg6[%c1_115, %c0_116, %c0_117] : memref<4x2x128xf32, #tpu.memory_space<vmem>>, vector<1x2x128xf32>
    %128 = vector.shape_cast %127 : vector<1x2x128xf32> to vector<2x128xf32>
    %129 = vector.broadcast %126 : vector<1x128xf32> to vector<2x128xf32>
    %130 = arith.mulf %129, %128 : vector<2x128xf32>
    %131 = arith.addf %125, %130 : vector<2x128xf32>
    %c14 = arith.constant 14 : index
    %c0_118 = arith.constant 0 : index
    %132 = vector.load %arg4[%c14, %c0_118] : memref<16x128xf32, #tpu.memory_space<vmem>>, vector<1x128xf32>
    %c2_119 = arith.constant 2 : index
    %c0_120 = arith.constant 0 : index
    %c0_121 = arith.constant 0 : index
    %133 = vector.load %arg6[%c2_119, %c0_120, %c0_121] : memref<4x2x128xf32, #tpu.memory_space<vmem>>, vector<1x2x128xf32>
    %134 = vector.shape_cast %133 : vector<1x2x128xf32> to vector<2x128xf32>
    %135 = vector.broadcast %132 : vector<1x128xf32> to vector<2x128xf32>
    %136 = arith.mulf %135, %134 : vector<2x128xf32>
    %137 = arith.addf %131, %136 : vector<2x128xf32>
    %c15 = arith.constant 15 : index
    %c0_122 = arith.constant 0 : index
    %138 = vector.load %arg4[%c15, %c0_122] : memref<16x128xf32, #tpu.memory_space<vmem>>, vector<1x128xf32>
    %c3_123 = arith.constant 3 : index
    %c0_124 = arith.constant 0 : index
    %c0_125 = arith.constant 0 : index
    %139 = vector.load %arg6[%c3_123, %c0_124, %c0_125] : memref<4x2x128xf32, #tpu.memory_space<vmem>>, vector<1x2x128xf32>
    %140 = vector.shape_cast %139 : vector<1x2x128xf32> to vector<2x128xf32>
    %141 = vector.broadcast %138 : vector<1x128xf32> to vector<2x128xf32>
    %142 = arith.mulf %141, %140 : vector<2x128xf32>
    %143 = arith.addf %137, %142 : vector<2x128xf32>
    %c0_126 = arith.constant 0 : index
    %c0_127 = arith.constant 0 : index
    %144 = vector.load %arg3[%c0_126, %c0_127] : memref<128x16xf32, #tpu.memory_space<vmem>>, vector<128x16xf32>
    %cst_128 = arith.constant dense<0.000000e+00> : vector<2x16xf32>
    %145 = tpu.matmul %143, %144, %cst_128 {dimension_numbers = #tpu.dot_dimension_numbers<[1], [0], [0], [1], [0, 0, 1, 1], [], []>} : vector<2x128xf32>, vector<128x16xf32>, vector<2x16xf32> -> vector<2x16xf32>
    %c3_129 = arith.constant 3 : index
    %c0_130 = arith.constant 0 : index
    %c0_131 = arith.constant 0 : index
    %146 = vector.load %arg1[%c3_129, %c0_130, %c0_131] : memref<4x2x16xf32, #tpu.memory_space<vmem>>, vector<1x2x16xf32>
    %147 = vector.shape_cast %146 : vector<1x2x16xf32> to vector<2x16xf32>
    %148 = arith.addf %145, %147 : vector<2x16xf32>
    %c3_132 = arith.constant 3 : index
    %c0_133 = arith.constant 0 : index
    %c0_134 = arith.constant 0 : index
    %149 = vector.load %arg5[%c3_132, %c0_133, %c0_134] : memref<4x2x16xf32, #tpu.memory_space<vmem>>, vector<1x2x16xf32>
    %150 = vector.shape_cast %149 : vector<1x2x16xf32> to vector<2x16xf32>
    %151 = vector.shape_cast %148 : vector<2x16xf32> to vector<1x2x16xf32>
    tpu.vector_store %arg5[%c3_132, %c0_133, %c0_134], %151 {strides = array<i32>} : memref<4x2x16xf32, #tpu.memory_space<vmem>>, vector<1x2x16xf32>,
    return
  }
  func.func @transform_0(%arg0: i32) -> (i32, i32, i32) {
    %c0_i32 = arith.constant 0 : i32
    %c0_i32_0 = arith.constant 0 : i32
    %c0_i32_1 = arith.constant 0 : i32
    return %c0_i32, %arg0, %c0_i32_0 : i32, i32, i32
  }
  func.func @transform_1(%arg0: i32) -> (i32, i32) {
    %c0_i32 = arith.constant 0 : i32
    %c0_i32_0 = arith.constant 0 : i32
    %c0_i32_1 = arith.constant 0 : i32
    return %c0_i32, %c0_i32_0 : i32, i32
  }
  func.func @transform_2(%arg0: i32) -> (i32, i32) {
    %c0_i32 = arith.constant 0 : i32
    %c0_i32_0 = arith.constant 0 : i32
    %c0_i32_1 = arith.constant 0 : i32
    return %c0_i32, %c0_i32_0 : i32, i32
  }
  func.func @transform_3(%arg0: i32) -> (i32, i32) {
    %c0_i32 = arith.constant 0 : i32
    %c0_i32_0 = arith.constant 0 : i32
    %c0_i32_1 = arith.constant 0 : i32
    return %c0_i32, %c0_i32_0 : i32, i32
  }
  func.func @transform_4(%arg0: i32) -> (i32, i32, i32) {
    %c0_i32 = arith.constant 0 : i32
    %c0_i32_0 = arith.constant 0 : i32
    %c0_i32_1 = arith.constant 0 : i32
    return %c0_i32, %arg0, %c0_i32_0 : i32, i32, i32
  }
}

</mosaic_0001>

<llo_original>
// kernel: tpu_custom_call.1
$region0: #{tpu_custom_call.1}
  #allocation0 [shape = 'u32[]', space=smem, size = 0x4, offset = 0x4, fixed_abs, tag = 'smem constant byte address 0x4 - core index']
  #allocation1 [shape = 'u32[144,128]{1,0:T(1,128)}', space=vmem, size = 0x12000, scoped, tag = 'internal scratch']
  #allocation2 [shape = 'f32[4,2,128]{2,1,0:T(2,128)}', space=vmem, size = 0x1000, scoped, tag = 'scratch operand']
  %s0 = inlined_call_operand.vmem [shape: f32[4,2,16], index: 0, kind: input, shape index: {}]
  %s1 = inlined_call_operand.vmem [shape: f32[16,128], index: 1, kind: input, shape index: {}]
  %s2 = inlined_call_operand.vmem [shape: f32[128,16], index: 2, kind: input, shape index: {}]
  %s3 = inlined_call_operand.vmem [shape: f32[16,128], index: 3, kind: input, shape index: {}]
  %s4 = inlined_call_operand.hbm [shape: f32[4,2,16], index: 4, kind: output, shape index: {}]
  %s5 = sld [smem:[#allocation0]]
  $region26: #{tpu_custom_call.1} parent=0
    _
  %s7 = ssub.s32 1, %s5
  %s8 = scalar_select 0, %s7, %s5
  $region1: #{tpu_custom_call.1} parent=0
    #allocation3 [shape = 'u8[4096]{0}', space=vmem, size = 0x1000, scoped, tag = 'output window, operand 0, single buffered']
    #allocation4 [shape = 's32[1]{0}', space=sflag, size = 0x4, scoped, tag = 'scoped memory for tpu_custom_call.1']
    %9 = vsyncpa [#allocation4], 0
    // Predicated region
    $region2: #{tpu_custom_call.1} parent=1 // pred_check
      _
    $region3: #{tpu_custom_call.1} parent=1 // pred_check_branch
      %11 = sbr.rel (0) target = $region5
    $region4: #{tpu_custom_call.1} parent=1 // pred_region
      _
    $region5: #{tpu_custom_call.1} parent=1 // pred_fallthru
      _
    // Predicated region
    $region6: #{tpu_custom_call.1} parent=1 // pred_check
      _
    $region7: #{tpu_custom_call.1} parent=1 // pred_check_branch
      %13 = sbr.rel (0) target = $region9
    $region8: #{tpu_custom_call.1} parent=1 // pred_region
      _
    $region9: #{tpu_custom_call.1} parent=1 // pred_fallthru
      _
    // Predicated region
    $region10: #{tpu_custom_call.1} parent=1 // pred_check
      _
    $region11: #{tpu_custom_call.1} parent=1 // pred_check_branch
      %15 = sbr.rel (0) target = $region13
    $region12: #{tpu_custom_call.1} parent=1 // pred_region
      _
    $region13: #{tpu_custom_call.1} parent=1 // pred_fallthru
      _
    // Predicated region
    $region14: #{tpu_custom_call.1} parent=1 // pred_check
      _
    $region15: #{tpu_custom_call.1} parent=1 // pred_check_branch
      %17 = sbr.rel (0) target = $region17
    $region16: #{tpu_custom_call.1} parent=1 // pred_region
      _
    $region17: #{tpu_custom_call.1} parent=1 // pred_fallthru
      _
    %v18 = vld [vmem:[%s0] sm:$0x3]
    %v19 = vld [vmem:[%s1] sm:$0xff]
    %v20 = vld [vmem:[%s1 + $0x8] sm:$0xff]
    %vm21 = vcmask 130048
    %v23 = vsel %vm21, %v18, 0
    %25 = vmatprep.subr.mxu0 0.0
    %26 = vmatpush1.msra.mxu0 %v19
    %27 = vmatprep.subr.mxu0 0.0
    %28 = vmatpush1.msra.mxu0 %v20
    %29 = vmatprep.subr.mxu0 0.0
    %30 = vmatpush1.msra.mxu0 0.0
    %31 = vmatprep.subr.mxu0 0.0
    %32 = vmatpush1.msra.mxu0 0.0
    %33 = vmatprep.subr.mxu0 0.0
    %34 = vmatpush1.msra.mxu0 0.0
    %35 = vmatprep.subr.mxu0 0.0
    %36 = vmatpush1.msra.mxu0 0.0
    %37 = vmatprep.subr.mxu0 0.0
    %38 = vmatpush1.msra.mxu0 0.0
    %39 = vmatprep.subr.mxu0 0.0
    %40 = vmatpush1.msra.mxu0 0.0
    %41 = vmatprep.subr.mxu0 0.0
    %42 = vmatpush1.msra.mxu0 0.0
    %43 = vmatprep.subr.mxu0 0.0
    %44 = vmatpush1.msra.mxu0 0.0
    %45 = vmatprep.subr.mxu0 0.0
    %46 = vmatpush1.msra.mxu0 0.0
    %47 = vmatprep.subr.mxu0 0.0
    %48 = vmatpush1.msra.mxu0 0.0
    %49 = vmatprep.subr.mxu0 0.0
    %50 = vmatpush1.msra.mxu0 0.0
    %51 = vmatprep.subr.mxu0 0.0
    %52 = vmatpush1.msra.mxu0 0.0
    %53 = vmatprep.subr.mxu0 0.0
    %54 = vmatpush1.msra.mxu0 0.0
    %55 = vmatprep.subr.mxu0 0.0
    %56 = vmatpush1.msra.mxu0 0.0
    %57 = vmatprep.subr.mxu0 0.0
    %58 = vmatpush1.msra.mxu0 0.0
    %59 = vmatprep.subr.mxu0 0.0
    %60 = vmatpush1.msra.mxu0 0.0
    %61 = vmatprep.subr.mxu0 0.0
    %62 = vmatpush1.msra.mxu0 0.0
    %63 = vmatprep.subr.mxu0 0.0
    %64 = vmatpush1.msra.mxu0 0.0
    %65 = vmatprep.subr.mxu0 0.0
    %66 = vmatpush1.msra.mxu0 0.0
    %67 = vmatprep.subr.mxu0 0.0
    %68 = vmatpush1.msra.mxu0 0.0
    %69 = vmatprep.subr.mxu0 0.0
    %70 = vmatpush1.msra.mxu0 0.0
    %71 = vmatprep.subr.mxu0 0.0
    %72 = vmatpush1.msra.mxu0 0.0
    %73 = vmatprep.subr.mxu0 0.0
    %74 = vmatpush1.msra.mxu0 0.0
    %75 = vmatprep.subr.mxu0 0.0
    %76 = vmatpush1.msra.mxu0 0.0
    %77 = vmatprep.subr.mxu0 0.0
    %78 = vmatpush1.msra.mxu0 0.0
    %79 = vmatprep.subr.mxu0 0.0
    %80 = vmatpush1.msra.mxu0 0.0
    %81 = vmatprep.subr.mxu0 0.0
    %82 = vmatpush1.msra.mxu0 0.0
    %83 = vmatprep.subr.mxu0 0.0
    %84 = vmatpush1.msra.mxu0 0.0
    %85 = vmatprep.subr.mxu0 0.0
    %86 = vmatpush1.msra.mxu0 0.0
    %87 = vmatprep.subr.mxu0 0.0
    %88 = vmatpush1.msra.mxu0 0.0
    %89 = vmatprep.mubr.f32.mxu0 0.0
    %90 = vmatmul.mubr.f32.gmra.mrb[0].mxu0 %v23
    %v91 = vpop.f32.mrb[0].mxu0
    %v92 = vadd.f32 0.0, %v91
    %v93 = vpop.f32.mrb[0].mxu0
    %94 = vdwg.mxu0
    %95 = vst [vmem:[#allocation2] sm:$0x3] %v92
    %s96 = scalar_lea.vmem %s0, 2
    %v97 = vld [vmem:[%s96] sm:$0x3]
    %v98 = vld [vmem:[%s1] sm:$0xff]
    %v99 = vld [vmem:[%s1 + $0x8] sm:$0xff]
    %v101 = vsel %vm21, %v97, 0
    %103 = vmatprep.subr.mxu0 0.0
    %104 = vmatpush1.msra.mxu0 %v98
    %105 = vmatprep.subr.mxu0 0.0
    %106 = vmatpush1.msra.mxu0 %v99
    %107 = vmatprep.subr.mxu0 0.0
    %108 = vmatpush1.msra.mxu0 0.0
    %109 = vmatprep.subr.mxu0 0.0
    %110 = vmatpush1.msra.mxu0 0.0
    %111 = vmatprep.subr.mxu0 0.0
    %112 = vmatpush1.msra.mxu0 0.0
    %113 = vmatprep.subr.mxu0 0.0
    %114 = vmatpush1.msra.mxu0 0.0
    %115 = vmatprep.subr.mxu0 0.0
    %116 = vmatpush1.msra.mxu0 0.0
    %117 = vmatprep.subr.mxu0 0.0
    %118 = vmatpush1.msra.mxu0 0.0
    %119 = vmatprep.subr.mxu0 0.0
    %120 = vmatpush1.msra.mxu0 0.0
    %121 = vmatprep.subr.mxu0 0.0
    %122 = vmatpush1.msra.mxu0 0.0
    %123 = vmatprep.subr.mxu0 0.0
    %124 = vmatpush1.msra.mxu0 0.0
    %125 = vmatprep.subr.mxu0 0.0
    %126 = vmatpush1.msra.mxu0 0.0
    %127 = vmatprep.subr.mxu0 0.0
    %128 = vmatpush1.msra.mxu0 0.0
    %129 = vmatprep.subr.mxu0 0.0
    %130 = vmatpush1.msra.mxu0 0.0
    %131 = vmatprep.subr.mxu0 0.0
    %132 = vmatpush1.msra.mxu0 0.0
    %133 = vmatprep.subr.mxu0 0.0
    %134 = vmatpush1.msra.mxu0 0.0
    %135 = vmatprep.subr.mxu0 0.0
    %136 = vmatpush1.msra.mxu0 0.0
    %137 = vmatprep.subr.mxu0 0.0
    %138 = vmatpush1.msra.mxu0 0.0
    %139 = vmatprep.subr.mxu0 0.0
    %140 = vmatpush1.msra.mxu0 0.0
    %141 = vmatprep.subr.mxu0 0.0
    %142 = vmatpush1.msra.mxu0 0.0
    %143 = vmatprep.subr.mxu0 0.0
    %144 = vmatpush1.msra.mxu0 0.0
    %145 = vmatprep.subr.mxu0 0.0
    %146 = vmatpush1.msra.mxu0 0.0
    %147 = vmatprep.subr.mxu0 0.0
    %148 = vmatpush1.msra.mxu0 0.0
    %149 = vmatprep.subr.mxu0 0.0
    %150 = vmatpush1.msra.mxu0 0.0
    %151 = vmatprep.subr.mxu0 0.0
    %152 = vmatpush1.msra.mxu0 0.0
    %153 = vmatprep.subr.mxu0 0.0
    %154 = vmatpush1.msra.mxu0 0.0
    %155 = vmatprep.subr.mxu0 0.0
    %156 = vmatpush1.msra.mxu0 0.0
    %157 = vmatprep.subr.mxu0 0.0
    %158 = vmatpush1.msra.mxu0 0.0
    %159 = vmatprep.subr.mxu0 0.0
    %160 = vmatpush1.msra.mxu0 0.0
    %161 = vmatprep.subr.mxu0 0.0
    %162 = vmatpush1.msra.mxu0 0.0
    %163 = vmatprep.subr.mxu0 0.0
    %164 = vmatpush1.msra.mxu0 0.0
    %165 = vmatprep.subr.mxu0 0.0
    %166 = vmatpush1.msra.mxu0 0.0
    %167 = vmatprep.mubr.f32.mxu0 0.0
    %168 = vmatmul.mubr.f32.gmra.mrb[0].mxu0 %v101
    %v169 = vpop.f32.mrb[0].mxu0
    %v170 = vadd.f32 0.0, %v169
    %v171 = vpop.f32.mrb[0].mxu0
    %172 = vdwg.mxu0
    %s173 = scalar_lea.vmem [#allocation2], 2
    %174 = vst [vmem:[%s173] sm:$0x3] %v170
    %s175 = scalar_lea.vmem %s0, 4
    %v176 = vld [vmem:[%s175] sm:$0x3]
    %v177 = vld [vmem:[%s1] sm:$0xff]
    %v178 = vld [vmem:[%s1 + $0x8] sm:$0xff]
    %v180 = vsel %vm21, %v176, 0
    %182 = vmatprep.subr.mxu0 0.0
    %183 = vmatpush1.msra.mxu0 %v177
    %184 = vmatprep.subr.mxu0 0.0
    %185 = vmatpush1.msra.mxu0 %v178
    %186 = vmatprep.subr.mxu0 0.0
    %187 = vmatpush1.msra.mxu0 0.0
    %188 = vmatprep.subr.mxu0 0.0
    %189 = vmatpush1.msra.mxu0 0.0
    %190 = vmatprep.subr.mxu0 0.0
    %191 = vmatpush1.msra.mxu0 0.0
    %192 = vmatprep.subr.mxu0 0.0
    %193 = vmatpush1.msra.mxu0 0.0
    %194 = vmatprep.subr.mxu0 0.0
    %195 = vmatpush1.msra.mxu0 0.0
    %196 = vmatprep.subr.mxu0 0.0
    %197 = vmatpush1.msra.mxu0 0.0
    %198 = vmatprep.subr.mxu0 0.0
    %199 = vmatpush1.msra.mxu0 0.0
    %200 = vmatprep.subr.mxu0 0.0
    %201 = vmatpush1.msra.mxu0 0.0
    %202 = vmatprep.subr.mxu0 0.0
    %203 = vmatpush1.msra.mxu0 0.0
    %204 = vmatprep.subr.mxu0 0.0
    %205 = vmatpush1.msra.mxu0 0.0
    %206 = vmatprep.subr.mxu0 0.0
    %207 = vmatpush1.msra.mxu0 0.0
    %208 = vmatprep.subr.mxu0 0.0
    %209 = vmatpush1.msra.mxu0 0.0
    %210 = vmatprep.subr.mxu0 0.0
    %211 = vmatpush1.msra.mxu0 0.0
    %212 = vmatprep.subr.mxu0 0.0
    %213 = vmatpush1.msra.mxu0 0.0
    %214 = vmatprep.subr.mxu0 0.0
    %215 = vmatpush1.msra.mxu0 0.0
    %216 = vmatprep.subr.mxu0 0.0
    %217 = vmatpush1.msra.mxu0 0.0
    %218 = vmatprep.subr.mxu0 0.0
    %219 = vmatpush1.msra.mxu0 0.0
    %220 = vmatprep.subr.mxu0 0.0
    %221 = vmatpush1.msra.mxu0 0.0
    %222 = vmatprep.subr.mxu0 0.0
    %223 = vmatpush1.msra.mxu0 0.0
    %224 = vmatprep.subr.mxu0 0.0
    %225 = vmatpush1.msra.mxu0 0.0
    %226 = vmatprep.subr.mxu0 0.0
    %227 = vmatpush1.msra.mxu0 0.0
    %228 = vmatprep.subr.mxu0 0.0
    %229 = vmatpush1.msra.mxu0 0.0
    %230 = vmatprep.subr.mxu0 0.0
    %231 = vmatpush1.msra.mxu0 0.0
    %232 = vmatprep.subr.mxu0 0.0
    %233 = vmatpush1.msra.mxu0 0.0
    %234 = vmatprep.subr.mxu0 0.0
    %235 = vmatpush1.msra.mxu0 0.0
    %236 = vmatprep.subr.mxu0 0.0
    %237 = vmatpush1.msra.mxu0 0.0
    %238 = vmatprep.subr.mxu0 0.0
    %239 = vmatpush1.msra.mxu0 0.0
    %240 = vmatprep.subr.mxu0 0.0
    %241 = vmatpush1.msra.mxu0 0.0
    %242 = vmatprep.subr.mxu0 0.0
    %243 = vmatpush1.msra.mxu0 0.0
    %244 = vmatprep.subr.mxu0 0.0
    %245 = vmatpush1.msra.mxu0 0.0
    %246 = vmatprep.mubr.f32.mxu0 0.0
    %247 = vmatmul.mubr.f32.gmra.mrb[0].mxu0 %v180
    %v248 = vpop.f32.mrb[0].mxu0
    %v249 = vadd.f32 0.0, %v248
    %v250 = vpop.f32.mrb[0].mxu0
    %251 = vdwg.mxu0
    %s252 = scalar_lea.vmem [#allocation2], 4
    %253 = vst [vmem:[%s252] sm:$0x3] %v249
    %s254 = scalar_lea.vmem %s0, 6
    %v255 = vld [vmem:[%s254] sm:$0x3]
    %v256 = vld [vmem:[%s1] sm:$0xff]
    %v257 = vld [vmem:[%s1 + $0x8] sm:$0xff]
    %v259 = vsel %vm21, %v255, 0
    %261 = vmatprep.subr.mxu0 0.0
    %262 = vmatpush1.msra.mxu0 %v256
    %263 = vmatprep.subr.mxu0 0.0
    %264 = vmatpush1.msra.mxu0 %v257
    %265 = vmatprep.subr.mxu0 0.0
    %266 = vmatpush1.msra.mxu0 0.0
    %267 = vmatprep.subr.mxu0 0.0
    %268 = vmatpush1.msra.mxu0 0.0
    %269 = vmatprep.subr.mxu0 0.0
    %270 = vmatpush1.msra.mxu0 0.0
    %271 = vmatprep.subr.mxu0 0.0
    %272 = vmatpush1.msra.mxu0 0.0
    %273 = vmatprep.subr.mxu0 0.0
    %274 = vmatpush1.msra.mxu0 0.0
    %275 = vmatprep.subr.mxu0 0.0
    %276 = vmatpush1.msra.mxu0 0.0
    %277 = vmatprep.subr.mxu0 0.0
    %278 = vmatpush1.msra.mxu0 0.0
    %279 = vmatprep.subr.mxu0 0.0
    %280 = vmatpush1.msra.mxu0 0.0
    %281 = vmatprep.subr.mxu0 0.0
    %282 = vmatpush1.msra.mxu0 0.0
    %283 = vmatprep.subr.mxu0 0.0
    %284 = vmatpush1.msra.mxu0 0.0
    %285 = vmatprep.subr.mxu0 0.0
    %286 = vmatpush1.msra.mxu0 0.0
    %287 = vmatprep.subr.mxu0 0.0
    %288 = vmatpush1.msra.mxu0 0.0
    %289 = vmatprep.subr.mxu0 0.0
    %290 = vmatpush1.msra.mxu0 0.0
    %291 = vmatprep.subr.mxu0 0.0
    %292 = vmatpush1.msra.mxu0 0.0
    %293 = vmatprep.subr.mxu0 0.0
    %294 = vmatpush1.msra.mxu0 0.0
    %295 = vmatprep.subr.mxu0 0.0
    %296 = vmatpush1.msra.mxu0 0.0
    %297 = vmatprep.subr.mxu0 0.0
    %298 = vmatpush1.msra.mxu0 0.0
    %299 = vmatprep.subr.mxu0 0.0
    %300 = vmatpush1.msra.mxu0 0.0
    %301 = vmatprep.subr.mxu0 0.0
    %302 = vmatpush1.msra.mxu0 0.0
    %303 = vmatprep.subr.mxu0 0.0
    %304 = vmatpush1.msra.mxu0 0.0
    %305 = vmatprep.subr.mxu0 0.0
    %306 = vmatpush1.msra.mxu0 0.0
    %307 = vmatprep.subr.mxu0 0.0
    %308 = vmatpush1.msra.mxu0 0.0
    %309 = vmatprep.subr.mxu0 0.0
    %310 = vmatpush1.msra.mxu0 0.0
    %311 = vmatprep.subr.mxu0 0.0
    %312 = vmatpush1.msra.mxu0 0.0
    %313 = vmatprep.subr.mxu0 0.0
    %314 = vmatpush1.msra.mxu0 0.0
    %315 = vmatprep.subr.mxu0 0.0
    %316 = vmatpush1.msra.mxu0 0.0
    %317 = vmatprep.subr.mxu0 0.0
    %318 = vmatpush1.msra.mxu0 0.0
    %319 = vmatprep.subr.mxu0 0.0
    %320 = vmatpush1.msra.mxu0 0.0
    %321 = vmatprep.subr.mxu0 0.0
    %322 = vmatpush1.msra.mxu0 0.0
    %323 = vmatprep.subr.mxu0 0.0
    %324 = vmatpush1.msra.mxu0 0.0
    %325 = vmatprep.mubr.f32.mxu0 0.0
    %326 = vmatmul.mubr.f32.gmra.mrb[0].mxu0 %v259
    %v327 = vpop.f32.mrb[0].mxu0
    %v328 = vadd.f32 0.0, %v327
    %v329 = vpop.f32.mrb[0].mxu0
    %330 = vdwg.mxu0
    %s331 = scalar_lea.vmem [#allocation2], 6
    %332 = vst [vmem:[%s331] sm:$0x3] %v328
    %v333 = vld [vmem:[%s3] sm:$0x1]
    %v334 = vld [vmem:[#allocation2] sm:$0x3]
    %v335 = vlaneseq
    %v336 = vshrl.u32 %v335, 7
    %v337 = vsub.s32 0, %v336
    %v338 = vrot.slane %v333, %v337
    %v339 = vmul.f32 %v338, %v334
    %v340 = vld [vmem:[%s3 + $0x1] sm:$0x1]
    %v341 = vld [vmem:[%s173] sm:$0x3]
    %v342 = vlaneseq
    %v343 = vshrl.u32 %v342, 7
    %v344 = vsub.s32 0, %v343
    %v345 = vrot.slane %v340, %v344
    %v346 = vmul.f32 %v345, %v341
    %v347 = vadd.f32 %v339, %v346
    %v348 = vld [vmem:[%s3 + $0x2] sm:$0x1]
    %v349 = vld [vmem:[%s252] sm:$0x3]
    %v350 = vlaneseq
    %v351 = vshrl.u32 %v350, 7
    %v352 = vsub.s32 0, %v351
    %v353 = vrot.slane %v348, %v352
    %v354 = vmul.f32 %v353, %v349
    %v355 = vadd.f32 %v347, %v354
    %v356 = vld [vmem:[%s3 + $0x3] sm:$0x1]
    %v357 = vld [vmem:[%s331] sm:$0x3]
    %v358 = vlaneseq
    %v359 = vshrl.u32 %v358, 7
    %v360 = vsub.s32 0, %v359
    %v361 = vrot.slane %v356, %v360
    %v362 = vmul.f32 %v361, %v357
    %v363 = vadd.f32 %v355, %v362
    %v364 = vld [vmem:[%s2] sm:$0xff]
    %v365 = vld [vmem:[%s2 + $0x8] sm:$0xff]
    %v366 = vld [vmem:[%s2 + $0x10] sm:$0xff]
    %v367 = vld [vmem:[%s2 + $0x18] sm:$0xff]
    %v368 = vld [vmem:[%s2 + $0x20] sm:$0xff]
    %v369 = vld [vmem:[%s2 + $0x28] sm:$0xff]
    %v370 = vld [vmem:[%s2 + $0x30] sm:$0xff]
    %v371 = vld [vmem:[%s2 + $0x38] sm:$0xff]
    %v372 = vld [vmem:[%s2 + $0x40] sm:$0xff]
    %v373 = vld [vmem:[%s2 + $0x48] sm:$0xff]
    %v374 = vld [vmem:[%s2 + $0x50] sm:$0xff]
    %v375 = vld [vmem:[%s2 + $0x58] sm:$0xff]
    %v376 = vld [vmem:[%s2 + $0x60] sm:$0xff]
    %v377 = vld [vmem:[%s2 + $0x68] sm:$0xff]
    %v378 = vld [vmem:[%s2 + $0x70] sm:$0xff]
    %v379 = vld [vmem:[%s2 + $0x78] sm:$0xff]
    %v380 = vld [vmem:[%s0] sm:$0x3]
    %381 = vmatprep.subr.mxu0 0.0
    %382 = vmatpush1.msra.mxu0 %v364
    %383 = vmatprep.subr.mxu0 0.0
    %384 = vmatpush1.msra.mxu0 %v365
    %385 = vmatprep.subr.mxu0 0.0
    %386 = vmatpush1.msra.mxu0 %v366
    %387 = vmatprep.subr.mxu0 0.0
    %388 = vmatpush1.msra.mxu0 %v367
    %389 = vmatprep.subr.mxu0 0.0
    %390 = vmatpush1.msra.mxu0 %v368
    %391 = vmatprep.subr.mxu0 0.0
    %392 = vmatpush1.msra.mxu0 %v369
    %393 = vmatprep.subr.mxu0 0.0
    %394 = vmatpush1.msra.mxu0 %v370
    %395 = vmatprep.subr.mxu0 0.0
    %396 = vmatpush1.msra.mxu0 %v371
    %397 = vmatprep.subr.mxu0 0.0
    %398 = vmatpush1.msra.mxu0 %v372
    %399 = vmatprep.subr.mxu0 0.0
    %400 = vmatpush1.msra.mxu0 %v373
    %401 = vmatprep.subr.mxu0 0.0
    %402 = vmatpush1.msra.mxu0 %v374
    %403 = vmatprep.subr.mxu0 0.0
    %404 = vmatpush1.msra.mxu0 %v375
    %405 = vmatprep.subr.mxu0 0.0
    %406 = vmatpush1.msra.mxu0 %v376
    %407 = vmatprep.subr.mxu0 0.0
    %408 = vmatpush1.msra.mxu0 %v377
    %409 = vmatprep.subr.mxu0 0.0
    %410 = vmatpush1.msra.mxu0 %v378
    %411 = vmatprep.subr.mxu0 0.0
    %412 = vmatpush1.msra.mxu0 %v379
    %413 = vmatprep.subr.mxu0 0.0
    %414 = vmatpush1.msra.mxu0 0.0
    %415 = vmatprep.subr.mxu0 0.0
    %416 = vmatpush1.msra.mxu0 0.0
    %417 = vmatprep.subr.mxu0 0.0
    %418 = vmatpush1.msra.mxu0 0.0
    %419 = vmatprep.subr.mxu0 0.0
    %420 = vmatpush1.msra.mxu0 0.0
    %421 = vmatprep.subr.mxu0 0.0
    %422 = vmatpush1.msra.mxu0 0.0
    %423 = vmatprep.subr.mxu0 0.0
    %424 = vmatpush1.msra.mxu0 0.0
    %425 = vmatprep.subr.mxu0 0.0
    %426 = vmatpush1.msra.mxu0 0.0
    %427 = vmatprep.subr.mxu0 0.0
    %428 = vmatpush1.msra.mxu0 0.0
    %429 = vmatprep.subr.mxu0 0.0
    %430 = vmatpush1.msra.mxu0 0.0
    %431 = vmatprep.subr.mxu0 0.0
    %432 = vmatpush1.msra.mxu0 0.0
    %433 = vmatprep.subr.mxu0 0.0
    %434 = vmatpush1.msra.mxu0 0.0
    %435 = vmatprep.subr.mxu0 0.0
    %436 = vmatpush1.msra.mxu0 0.0
    %437 = vmatprep.subr.mxu0 0.0
    %438 = vmatpush1.msra.mxu0 0.0
    %439 = vmatprep.subr.mxu0 0.0
    %440 = vmatpush1.msra.mxu0 0.0
    %441 = vmatprep.subr.mxu0 0.0
    %442 = vmatpush1.msra.mxu0 0.0
    %443 = vmatprep.subr.mxu0 0.0
    %444 = vmatpush1.msra.mxu0 0.0
    %445 = vmatprep.mubr.f32.mxu0 0.0
    %446 = vmatmul.mubr.f32.gmra.mrb[0].mxu0 %v363
    %v447 = vpop.f32.mrb[0].mxu0
    %v448 = vadd.f32 %v380, %v447
    %v449 = vpop.f32.mrb[0].mxu0
    %450 = vdwg.mxu0
    %vm451 = vcmask 123904
    %452 = vst.msk [vmem:[#allocation3] sm:$0x3] %vm451, %v448
    %v453 = vld [vmem:[%s3 + $0x4] sm:$0x1]
    %v454 = vld [vmem:[#allocation2] sm:$0x3]
    %v455 = vlaneseq
    %v456 = vshrl.u32 %v455, 7
    %v457 = vsub.s32 0, %v456
    %v458 = vrot.slane %v453, %v457
    %v459 = vmul.f32 %v458, %v454
    %v460 = vld [vmem:[%s3 + $0x5] sm:$0x1]
    %v461 = vld [vmem:[%s173] sm:$0x3]
    %v462 = vlaneseq
    %v463 = vshrl.u32 %v462, 7
    %v464 = vsub.s32 0, %v463
    %v465 = vrot.slane %v460, %v464
    %v466 = vmul.f32 %v465, %v461
    %v467 = vadd.f32 %v459, %v466
    %v468 = vld [vmem:[%s3 + $0x6] sm:$0x1]
    %v469 = vld [vmem:[%s252] sm:$0x3]
    %v470 = vlaneseq
    %v471 = vshrl.u32 %v470, 7
    %v472 = vsub.s32 0, %v471
    %v473 = vrot.slane %v468, %v472
    %v474 = vmul.f32 %v473, %v469
    %v475 = vadd.f32 %v467, %v474
    %v476 = vld [vmem:[%s3 + $0x7] sm:$0x1]
    %v477 = vld [vmem:[%s331] sm:$0x3]
    %v478 = vlaneseq
    %v479 = vshrl.u32 %v478, 7
    %v480 = vsub.s32 0, %v479
    %v481 = vrot.slane %v476, %v480
    %v482 = vmul.f32 %v481, %v477
    %v483 = vadd.f32 %v475, %v482
    %v484 = vld [vmem:[%s2] sm:$0xff]
    %v485 = vld [vmem:[%s2 + $0x8] sm:$0xff]
    %v486 = vld [vmem:[%s2 + $0x10] sm:$0xff]
    %v487 = vld [vmem:[%s2 + $0x18] sm:$0xff]
    %v488 = vld [vmem:[%s2 + $0x20] sm:$0xff]
    %v489 = vld [vmem:[%s2 + $0x28] sm:$0xff]
    %v490 = vld [vmem:[%s2 + $0x30] sm:$0xff]
    %v491 = vld [vmem:[%s2 + $0x38] sm:$0xff]
    %v492 = vld [vmem:[%s2 + $0x40] sm:$0xff]
    %v493 = vld [vmem:[%s2 + $0x48] sm:$0xff]
    %v494 = vld [vmem:[%s2 + $0x50] sm:$0xff]
    %v495 = vld [vmem:[%s2 + $0x58] sm:$0xff]
    %v496 = vld [vmem:[%s2 + $0x60] sm:$0xff]
    %v497 = vld [vmem:[%s2 + $0x68] sm:$0xff]
    %v498 = vld [vmem:[%s2 + $0x70] sm:$0xff]
    %v499 = vld [vmem:[%s2 + $0x78] sm:$0xff]
    %v500 = vld [vmem:[%s96] sm:$0x3]
    %501 = vmatprep.subr.mxu0 0.0
    %502 = vmatpush1.msra.mxu0 %v484
    %503 = vmatprep.subr.mxu0 0.0
    %504 = vmatpush1.msra.mxu0 %v485
    %505 = vmatprep.subr.mxu0 0.0
    %506 = vmatpush1.msra.mxu0 %v486
    %507 = vmatprep.subr.mxu0 0.0
    %508 = vmatpush1.msra.mxu0 %v487
    %509 = vmatprep.subr.mxu0 0.0
    %510 = vmatpush1.msra.mxu0 %v488
    %511 = vmatprep.subr.mxu0 0.0
    %512 = vmatpush1.msra.mxu0 %v489
    %513 = vmatprep.subr.mxu0 0.0
    %514 = vmatpush1.msra.mxu0 %v490
    %515 = vmatprep.subr.mxu0 0.0
    %516 = vmatpush1.msra.mxu0 %v491
    %517 = vmatprep.subr.mxu0 0.0
    %518 = vmatpush1.msra.mxu0 %v492
    %519 = vmatprep.subr.mxu0 0.0
    %520 = vmatpush1.msra.mxu0 %v493
    %521 = vmatprep.subr.mxu0 0.0
    %522 = vmatpush1.msra.mxu0 %v494
    %523 = vmatprep.subr.mxu0 0.0
    %524 = vmatpush1.msra.mxu0 %v495
    %525 = vmatprep.subr.mxu0 0.0
    %526 = vmatpush1.msra.mxu0 %v496
    %527 = vmatprep.subr.mxu0 0.0
    %528 = vmatpush1.msra.mxu0 %v497
    %529 = vmatprep.subr.mxu0 0.0
    %530 = vmatpush1.msra.mxu0 %v498
    %531 = vmatprep.subr.mxu0 0.0
    %532 = vmatpush1.msra.mxu0 %v499
    %533 = vmatprep.subr.mxu0 0.0
    %534 = vmatpush1.msra.mxu0 0.0
    %535 = vmatprep.subr.mxu0 0.0
    %536 = vmatpush1.msra.mxu0 0.0
    %537 = vmatprep.subr.mxu0 0.0
    %538 = vmatpush1.msra.mxu0 0.0
    %539 = vmatprep.subr.mxu0 0.0
    %540 = vmatpush1.msra.mxu0 0.0
    %541 = vmatprep.subr.mxu0 0.0
    %542 = vmatpush1.msra.mxu0 0.0
    %543 = vmatprep.subr.mxu0 0.0
    %544 = vmatpush1.msra.mxu0 0.0
    %545 = vmatprep.subr.mxu0 0.0
    %546 = vmatpush1.msra.mxu0 0.0
    %547 = vmatprep.subr.mxu0 0.0
    %548 = vmatpush1.msra.mxu0 0.0
    %549 = vmatprep.subr.mxu0 0.0
    %550 = vmatpush1.msra.mxu0 0.0
    %551 = vmatprep.subr.mxu0 0.0
    %552 = vmatpush1.msra.mxu0 0.0
    %553 = vmatprep.subr.mxu0 0.0
    %554 = vmatpush1.msra.mxu0 0.0
    %555 = vmatprep.subr.mxu0 0.0
    %556 = vmatpush1.msra.mxu0 0.0
    %557 = vmatprep.subr.mxu0 0.0
    %558 = vmatpush1.msra.mxu0 0.0
    %559 = vmatprep.subr.mxu0 0.0
    %560 = vmatpush1.msra.mxu0 0.0
    %561 = vmatprep.subr.mxu0 0.0
    %562 = vmatpush1.msra.mxu0 0.0
    %563 = vmatprep.subr.mxu0 0.0
    %564 = vmatpush1.msra.mxu0 0.0
    %565 = vmatprep.mubr.f32.mxu0 0.0
    %566 = vmatmul.mubr.f32.gmra.mrb[0].mxu0 %v483
    %v567 = vpop.f32.mrb[0].mxu0
    %v568 = vadd.f32 %v500, %v567
    %v569 = vpop.f32.mrb[0].mxu0
    %570 = vdwg.mxu0
    %s571 = scalar_lea.vmem [#allocation3], 2
    %572 = vst.msk [vmem:[%s571] sm:$0x3] %vm451, %v568
    %v573 = vld [vmem:[%s3 + $0x8] sm:$0x1]
    %v574 = vld [vmem:[#allocation2] sm:$0x3]
    %v575 = vlaneseq
    %v576 = vshrl.u32 %v575, 7
    %v577 = vsub.s32 0, %v576
    %v578 = vrot.slane %v573, %v577
    %v579 = vmul.f32 %v578, %v574
    %v580 = vld [vmem:[%s3 + $0x9] sm:$0x1]
    %v581 = vld [vmem:[%s173] sm:$0x3]
    %v582 = vlaneseq
    %v583 = vshrl.u32 %v582, 7
    %v584 = vsub.s32 0, %v583
    %v585 = vrot.slane %v580, %v584
    %v586 = vmul.f32 %v585, %v581
    %v587 = vadd.f32 %v579, %v586
    %v588 = vld [vmem:[%s3 + $0xa] sm:$0x1]
    %v589 = vld [vmem:[%s252] sm:$0x3]
    %v590 = vlaneseq
    %v591 = vshrl.u32 %v590, 7
    %v592 = vsub.s32 0, %v591
    %v593 = vrot.slane %v588, %v592
    %v594 = vmul.f32 %v593, %v589
    %v595 = vadd.f32 %v587, %v594
    %v596 = vld [vmem:[%s3 + $0xb] sm:$0x1]
    %v597 = vld [vmem:[%s331] sm:$0x3]
    %v598 = vlaneseq
    %v599 = vshrl.u32 %v598, 7
    %v600 = vsub.s32 0, %v599
    %v601 = vrot.slane %v596, %v600
    %v602 = vmul.f32 %v601, %v597
    %v603 = vadd.f32 %v595, %v602
    %v604 = vld [vmem:[%s2] sm:$0xff]
    %v605 = vld [vmem:[%s2 + $0x8] sm:$0xff]
    %v606 = vld [vmem:[%s2 + $0x10] sm:$0xff]
    %v607 = vld [vmem:[%s2 + $0x18] sm:$0xff]
    %v608 = vld [vmem:[%s2 + $0x20] sm:$0xff]
    %v609 = vld [vmem:[%s2 + $0x28] sm:$0xff]
    %v610 = vld [vmem:[%s2 + $0x30] sm:$0xff]
    %v611 = vld [vmem:[%s2 + $0x38] sm:$0xff]
    %v612 = vld [vmem:[%s2 + $0x40] sm:$0xff]
    %v613 = vld [vmem:[%s2 + $0x48] sm:$0xff]
    %v614 = vld [vmem:[%s2 + $0x50] sm:$0xff]
    %v615 = vld [vmem:[%s2 + $0x58] sm:$0xff]
    %v616 = vld [vmem:[%s2 + $0x60] sm:$0xff]
    %v617 = vld [vmem:[%s2 + $0x68] sm:$0xff]
    %v618 = vld [vmem:[%s2 + $0x70] sm:$0xff]
    %v619 = vld [vmem:[%s2 + $0x78] sm:$0xff]
    %v620 = vld [vmem:[%s175] sm:$0x3]
    %621 = vmatprep.subr.mxu0 0.0
    %622 = vmatpush1.msra.mxu0 %v604
    %623 = vmatprep.subr.mxu0 0.0
    %624 = vmatpush1.msra.mxu0 %v605
    %625 = vmatprep.subr.mxu0 0.0
    %626 = vmatpush1.msra.mxu0 %v606
    %627 = vmatprep.subr.mxu0 0.0
    %628 = vmatpush1.msra.mxu0 %v607
    %629 = vmatprep.subr.mxu0 0.0
    %630 = vmatpush1.msra.mxu0 %v608
    %631 = vmatprep.subr.mxu0 0.0
    %632 = vmatpush1.msra.mxu0 %v609
    %633 = vmatprep.subr.mxu0 0.0
    %634 = vmatpush1.msra.mxu0 %v610
    %635 = vmatprep.subr.mxu0 0.0
    %636 = vmatpush1.msra.mxu0 %v611
    %637 = vmatprep.subr.mxu0 0.0
    %638 = vmatpush1.msra.mxu0 %v612
    %639 = vmatprep.subr.mxu0 0.0
    %640 = vmatpush1.msra.mxu0 %v613
    %641 = vmatprep.subr.mxu0 0.0
    %642 = vmatpush1.msra.mxu0 %v614
    %643 = vmatprep.subr.mxu0 0.0
    %644 = vmatpush1.msra.mxu0 %v615
    %645 = vmatprep.subr.mxu0 0.0
    %646 = vmatpush1.msra.mxu0 %v616
    %647 = vmatprep.subr.mxu0 0.0
    %648 = vmatpush1.msra.mxu0 %v617
    %649 = vmatprep.subr.mxu0 0.0
    %650 = vmatpush1.msra.mxu0 %v618
    %651 = vmatprep.subr.mxu0 0.0
    %652 = vmatpush1.msra.mxu0 %v619
    %653 = vmatprep.subr.mxu0 0.0
    %654 = vmatpush1.msra.mxu0 0.0
    %655 = vmatprep.subr.mxu0 0.0
    %656 = vmatpush1.msra.mxu0 0.0
    %657 = vmatprep.subr.mxu0 0.0
    %658 = vmatpush1.msra.mxu0 0.0
    %659 = vmatprep.subr.mxu0 0.0
    %660 = vmatpush1.msra.mxu0 0.0
    %661 = vmatprep.subr.mxu0 0.0
    %662 = vmatpush1.msra.mxu0 0.0
    %663 = vmatprep.subr.mxu0 0.0
    %664 = vmatpush1.msra.mxu0 0.0
    %665 = vmatprep.subr.mxu0 0.0
    %666 = vmatpush1.msra.mxu0 0.0
    %667 = vmatprep.subr.mxu0 0.0
    %668 = vmatpush1.msra.mxu0 0.0
    %669 = vmatprep.subr.mxu0 0.0
    %670 = vmatpush1.msra.mxu0 0.0
    %671 = vmatprep.subr.mxu0 0.0
    %672 = vmatpush1.msra.mxu0 0.0
    %673 = vmatprep.subr.mxu0 0.0
    %674 = vmatpush1.msra.mxu0 0.0
    %675 = vmatprep.subr.mxu0 0.0
    %676 = vmatpush1.msra.mxu0 0.0
    %677 = vmatprep.subr.mxu0 0.0
    %678 = vmatpush1.msra.mxu0 0.0
    %679 = vmatprep.subr.mxu0 0.0
    %680 = vmatpush1.msra.mxu0 0.0
    %681 = vmatprep.subr.mxu0 0.0
    %682 = vmatpush1.msra.mxu0 0.0
    %683 = vmatprep.subr.mxu0 0.0
    %684 = vmatpush1.msra.mxu0 0.0
    %685 = vmatprep.mubr.f32.mxu0 0.0
    %686 = vmatmul.mubr.f32.gmra.mrb[0].mxu0 %v603
    %v687 = vpop.f32.mrb[0].mxu0
    %v688 = vadd.f32 %v620, %v687
    %v689 = vpop.f32.mrb[0].mxu0
    %690 = vdwg.mxu0
    %s691 = scalar_lea.vmem [#allocation3], 4
    %692 = vst.msk [vmem:[%s691] sm:$0x3] %vm451, %v688
    %v693 = vld [vmem:[%s3 + $0xc] sm:$0x1]
    %v694 = vld [vmem:[#allocation2] sm:$0x3]
    %v695 = vlaneseq
    %v696 = vshrl.u32 %v695, 7
    %v697 = vsub.s32 0, %v696
    %v698 = vrot.slane %v693, %v697
    %v699 = vmul.f32 %v698, %v694
    %v700 = vld [vmem:[%s3 + $0xd] sm:$0x1]
    %v701 = vld [vmem:[%s173] sm:$0x3]
    %v702 = vlaneseq
    %v703 = vshrl.u32 %v702, 7
    %v704 = vsub.s32 0, %v703
    %v705 = vrot.slane %v700, %v704
    %v706 = vmul.f32 %v705, %v701
    %v707 = vadd.f32 %v699, %v706
    %v708 = vld [vmem:[%s3 + $0xe] sm:$0x1]
    %v709 = vld [vmem:[%s252] sm:$0x3]
    %v710 = vlaneseq
    %v711 = vshrl.u32 %v710, 7
    %v712 = vsub.s32 0, %v711
    %v713 = vrot.slane %v708, %v712
    %v714 = vmul.f32 %v713, %v709
    %v715 = vadd.f32 %v707, %v714
    %v716 = vld [vmem:[%s3 + $0xf] sm:$0x1]
    %v717 = vld [vmem:[%s331] sm:$0x3]
    %v718 = vlaneseq
    %v719 = vshrl.u32 %v718, 7
    %v720 = vsub.s32 0, %v719
    %v721 = vrot.slane %v716, %v720
    %v722 = vmul.f32 %v721, %v717
    %v723 = vadd.f32 %v715, %v722
    %v724 = vld [vmem:[%s2] sm:$0xff]
    %v725 = vld [vmem:[%s2 + $0x8] sm:$0xff]
    %v726 = vld [vmem:[%s2 + $0x10] sm:$0xff]
    %v727 = vld [vmem:[%s2 + $0x18] sm:$0xff]
    %v728 = vld [vmem:[%s2 + $0x20] sm:$0xff]
    %v729 = vld [vmem:[%s2 + $0x28] sm:$0xff]
    %v730 = vld [vmem:[%s2 + $0x30] sm:$0xff]
    %v731 = vld [vmem:[%s2 + $0x38] sm:$0xff]
    %v732 = vld [vmem:[%s2 + $0x40] sm:$0xff]
    %v733 = vld [vmem:[%s2 + $0x48] sm:$0xff]
    %v734 = vld [vmem:[%s2 + $0x50] sm:$0xff]
    %v735 = vld [vmem:[%s2 + $0x58] sm:$0xff]
    %v736 = vld [vmem:[%s2 + $0x60] sm:$0xff]
    %v737 = vld [vmem:[%s2 + $0x68] sm:$0xff]
    %v738 = vld [vmem:[%s2 + $0x70] sm:$0xff]
    %v739 = vld [vmem:[%s2 + $0x78] sm:$0xff]
    %v740 = vld [vmem:[%s254] sm:$0x3]
    %741 = vmatprep.subr.mxu0 0.0
    %742 = vmatpush1.msra.mxu0 %v724
    %743 = vmatprep.subr.mxu0 0.0
    %744 = vmatpush1.msra.mxu0 %v725
    %745 = vmatprep.subr.mxu0 0.0
    %746 = vmatpush1.msra.mxu0 %v726
    %747 = vmatprep.subr.mxu0 0.0
    %748 = vmatpush1.msra.mxu0 %v727
    %749 = vmatprep.subr.mxu0 0.0
    %750 = vmatpush1.msra.mxu0 %v728
    %751 = vmatprep.subr.mxu0 0.0
    %752 = vmatpush1.msra.mxu0 %v729
    %753 = vmatprep.subr.mxu0 0.0
    %754 = vmatpush1.msra.mxu0 %v730
    %755 = vmatprep.subr.mxu0 0.0
    %756 = vmatpush1.msra.mxu0 %v731
    %757 = vmatprep.subr.mxu0 0.0
    %758 = vmatpush1.msra.mxu0 %v732
    %759 = vmatprep.subr.mxu0 0.0
    %760 = vmatpush1.msra.mxu0 %v733
    %761 = vmatprep.subr.mxu0 0.0
    %762 = vmatpush1.msra.mxu0 %v734
    %763 = vmatprep.subr.mxu0 0.0
    %764 = vmatpush1.msra.mxu0 %v735
    %765 = vmatprep.subr.mxu0 0.0
    %766 = vmatpush1.msra.mxu0 %v736
    %767 = vmatprep.subr.mxu0 0.0
    %768 = vmatpush1.msra.mxu0 %v737
    %769 = vmatprep.subr.mxu0 0.0
    %770 = vmatpush1.msra.mxu0 %v738
    %771 = vmatprep.subr.mxu0 0.0
    %772 = vmatpush1.msra.mxu0 %v739
    %773 = vmatprep.subr.mxu0 0.0
    %774 = vmatpush1.msra.mxu0 0.0
    %775 = vmatprep.subr.mxu0 0.0
    %776 = vmatpush1.msra.mxu0 0.0
    %777 = vmatprep.subr.mxu0 0.0
    %778 = vmatpush1.msra.mxu0 0.0
    %779 = vmatprep.subr.mxu0 0.0
    %780 = vmatpush1.msra.mxu0 0.0
    %781 = vmatprep.subr.mxu0 0.0
    %782 = vmatpush1.msra.mxu0 0.0
    %783 = vmatprep.subr.mxu0 0.0
    %784 = vmatpush1.msra.mxu0 0.0
    %785 = vmatprep.subr.mxu0 0.0
    %786 = vmatpush1.msra.mxu0 0.0
    %787 = vmatprep.subr.mxu0 0.0
    %788 = vmatpush1.msra.mxu0 0.0
    %789 = vmatprep.subr.mxu0 0.0
    %790 = vmatpush1.msra.mxu0 0.0
    %791 = vmatprep.subr.mxu0 0.0
    %792 = vmatpush1.msra.mxu0 0.0
    %793 = vmatprep.subr.mxu0 0.0
    %794 = vmatpush1.msra.mxu0 0.0
    %795 = vmatprep.subr.mxu0 0.0
    %796 = vmatpush1.msra.mxu0 0.0
    %797 = vmatprep.subr.mxu0 0.0
    %798 = vmatpush1.msra.mxu0 0.0
    %799 = vmatprep.subr.mxu0 0.0
    %800 = vmatpush1.msra.mxu0 0.0
    %801 = vmatprep.subr.mxu0 0.0
    %802 = vmatpush1.msra.mxu0 0.0
    %803 = vmatprep.subr.mxu0 0.0
    %804 = vmatpush1.msra.mxu0 0.0
    %805 = vmatprep.mubr.f32.mxu0 0.0
    %806 = vmatmul.mubr.f32.gmra.mrb[0].mxu0 %v723
    %v807 = vpop.f32.mrb[0].mxu0
    %v808 = vadd.f32 %v740, %v807
    %v809 = vpop.f32.mrb[0].mxu0
    %810 = vdwg.mxu0
    %s811 = scalar_lea.vmem [#allocation3], 6
    %812 = vst.msk [vmem:[%s811] sm:$0x3] %vm451, %v808
    // Predicated region
    $region18: #{tpu_custom_call.1} parent=1 // pred_check
      _
    $region19: #{tpu_custom_call.1} parent=1 // pred_check_branch
      %814 = sbr.rel (0) target = $region21
    $region20: #{tpu_custom_call.1} parent=1 // pred_region
      %s816 = ssub.s32 128, 128
      %817 = vsyncadd [#allocation4], %s816
      %s818 = sshll.u32 [#allocation3], 4
      %s819 = int_to_ptr.vmem [resolvable:$true] %s818
      %824 = dma.vmem_to_hbm [thread:$0]  %s819, 128, %s4, [#allocation4], 32, 32, 2
    $region21: #{tpu_custom_call.1} parent=1 // pred_fallthru
      _
    // Predicated region
    $region22: #{tpu_custom_call.1} parent=1 // pred_check
      _
    $region23: #{tpu_custom_call.1} parent=1 // pred_check_branch
      %826 = sbr.rel (0) target = $region25
    $region24: #{tpu_custom_call.1} parent=1 // pred_region
      %827 = dma.done [#allocation4], 128
    $region25: #{tpu_custom_call.1} parent=1 // pred_fallthru
      _
    %828 = vsyncpa [#allocation4], 1

</llo_original>
